<compile_context>
chip_gen: v7x
topology: tpu7x:2x2x1
jax: 0.10.0
libtpu: 0.0.40
codegen_flags: <defaults>
</compile_context>

<pallas_src>
import math

import jax
import jax.numpy as jnp
from jax.experimental import pallas as pl
from jax.experimental.pallas import tpu as pltpu


def _gcn_kernel(x_ref, adj_ref, wblk_ref, b_ref, o_ref):
    """One row tile of:  out = (adj @ X) @ kron(I_T, W) + bias.

    x_ref:    (N, T*C_in)       full node features, grid-invariant
    adj_ref:  (RB, N)           row tile of the adjacency matrix
    wblk_ref: (T*C_in, T*C_out) block-diagonal kron(I_T, W), grid-invariant
    b_ref:    (1, T*C_out)      bias tiled across T (f32), grid-invariant
    o_ref:    (RB, T*C_out)     lane-dense output row tile (f32-accumulated)
    """
    # (RB, N) @ (N, T*C_in) -> (RB, T*C_in)   [MXU, f32 accumulate]
    agg = jnp.dot(adj_ref[...], x_ref[...], preferred_element_type=jnp.float32)
    # Cast the intermediate back to the operand dtype so the MXU stays bf16-native
    # (an f32 @ bf16 dot would force a slow multi-pass f32 matmul); kron(I_T, W)
    # means no in-kernel reshape is needed and the output is already lane-dense.
    out = jnp.dot(agg.astype(wblk_ref.dtype), wblk_ref[...],
                  preferred_element_type=jnp.float32)
    # Epilogue stays f32 (v5e VPU has no bf16 datapath); 256-lane unmasked store.
    o_ref[...] = (out + b_ref[...]).astype(o_ref.dtype)


def _default_row_block(nodes):
    # At least two row tiles once the graph is non-trivial so the "parallel"
    # grid axis actually shards across v7x's two TensorCores; keep tiles large
    # (<= 1024 rows, ideally 256-1024 for big graphs) so the ~0.35us per-grid-step
    # overhead stays hidden.
    if nodes < 16:
        return nodes
    rb = min(-(-nodes // 2), 1024)        # ceil(N/2), capped
    rb = ((rb + 7) // 8) * 8              # multiple of 8 (sublane)
    return min(rb, nodes)


def _vmem_limit_bytes():
    # ~85% of per-core VMEM: ~54 MiB on v7x (64 MiB/TC), ~109 MiB on v5e/v6e
    # (128 MiB). Leaves headroom for compiler scratch and double buffers.
    try:
        cap = pltpu.get_tpu_info().vmem_capacity_bytes
    except Exception:
        cap = 64 * 1024 * 1024            # conservative fallback (v7x per-TC)
    return int(cap * 0.85)


def graph_conv_layer(x, adj, weights, bias, *, row_block=None, use_bf16=True):
    """x: (N, T, C_in), adj: (N, N), weights: (C_in, C_out), bias: (C_out,)
    -> (N, T, C_out).  Matches GraphConvLayer.forward."""
    nodes, time_steps, in_ch = x.shape
    out_ch = weights.shape[1]
    lanes = time_steps * out_ch

    # bf16 operands for the bf16-native MXU; accumulation stays f32 in-kernel.
    cdt = jnp.bfloat16 if use_bf16 else x.dtype
    x_flat = x.reshape(nodes, time_steps * in_ch).astype(cdt)   # contiguous view
    adj_c = adj.astype(cdt)
    # Block-diagonal weight expansion: (N, T*C_in) @ kron(I_T, W) applies W per
    # time step and lands directly in (N, T*C_out) element order (lane-dense).
    w_blk = jnp.kron(jnp.eye(time_steps, dtype=jnp.float32),
                     weights.astype(jnp.float32)).astype(cdt)
    bias_row = jnp.tile(bias.astype(jnp.float32), time_steps).reshape(1, lanes)

    if row_block is None:
        row_block = _default_row_block(nodes)
    if row_block != nodes:
        assert row_block % 8 == 0, "row_block must be a multiple of 8"
    grid = (pl.cdiv(nodes, row_block),)
    # When nodes % row_block != 0, the padded adj rows of the last tile only feed
    # padded output rows, which Pallas discards — correctness is unaffected.

    itemsize = jnp.dtype(cdt).itemsize
    cost = pl.CostEstimate(
        flops=(2 * nodes * nodes * time_steps * in_ch
               + 2 * nodes * time_steps * in_ch * out_ch),
        transcendentals=0,
        bytes_accessed=((x_flat.size + adj_c.size + w_blk.size) * itemsize
                        + bias_row.size * 4
                        + nodes * lanes * jnp.dtype(x.dtype).itemsize),
    )

    single = pl.Buffered(1)   # grid-invariant inputs: skip the wasted 2nd buffer
    out_flat = pl.pallas_call(
        _gcn_kernel,
        out_shape=jax.ShapeDtypeStruct((nodes, lanes), x.dtype),
        grid_spec=pltpu.PrefetchScalarGridSpec(
            num_scalar_prefetch=0,
            grid=grid,
            in_specs=[
                pl.BlockSpec((nodes, time_steps * in_ch), lambda r: (0, 0),
                             pipeline_mode=single),                        # X
                pl.BlockSpec((row_block, nodes), lambda r: (r, 0)),        # adj rows
                pl.BlockSpec((time_steps * in_ch, lanes), lambda r: (0, 0),
                             pipeline_mode=single),                        # kron(I,W)
                pl.BlockSpec((1, lanes), lambda r: (0, 0),
                             pipeline_mode=single),                        # bias
            ],
            out_specs=pl.BlockSpec((row_block, lanes), lambda r: (r, 0)),
        ),
        compiler_params=pltpu.CompilerParams(
            dimension_semantics=("parallel",),        # row tiles shard across TCs
            vmem_limit_bytes=_vmem_limit_bytes(),
        ),
        cost_estimate=cost,
    )(x_flat, adj_c, w_blk, bias_row)

    # TODO(synk): for very large N, add an "arbitrary" grid axis over the adj
    # contraction dim (K-tiling of x_flat) with a pl.when-initialized f32 VMEM
    # accumulator so x_flat need not be fully VMEM-resident (matters on v7x).

    # (N, T*C_out) -> (N, T, C_out): contiguous reshape, elements already ordered.
    return out_flat.reshape(nodes, time_steps, out_ch)


def _xavier_uniform(key, in_ch, out_ch, dtype=jnp.float32):
    bound = math.sqrt(6.0 / (in_ch + out_ch))
    return jax.random.uniform(key, (in_ch, out_ch), dtype=dtype,
                              minval=-bound, maxval=bound)


if __name__ == "__main__":
    key = jax.random.PRNGKey(0)
    k_x, k_adj, k_w = jax.random.split(key, 3)

    nodes, time_steps = 16, 8
    in_channels, out_channels = 4, 32

    x = jax.random.normal(k_x, (nodes, time_steps, in_channels), dtype=jnp.float32)
    adj = jax.random.uniform(k_adj, (nodes, nodes), dtype=jnp.float32)

    weights = _xavier_uniform(k_w, in_channels, out_channels)   # xavier_uniform_
    bias = jnp.zeros((out_channels,), dtype=jnp.float32)        # zeros_

    out = graph_conv_layer(x, adj, weights, bias)
    jax.block_until_ready(out)

    # Reference check in plain JAX (same math as the PyTorch forward, pure f32).
    support_ref = jnp.einsum('tni,io->tno', jnp.transpose(x, (1, 0, 2)), weights)
    out_ref = jnp.einsum('nm,tmo->tno', adj, support_ref)
    out_ref = jnp.transpose(out_ref, (1, 0, 2)) + bias

    assert out.shape == (nodes, time_steps, out_channels)
    # Tolerance accounts for the bf16 operand cast (accumulation is f32 in-kernel).
    assert jnp.allclose(out, out_ref, rtol=2e-2, atol=5e-2), \
        float(jnp.max(jnp.abs(out - out_ref)))

    print("KERNEL_OK")
</pallas_src>

<mosaic_0001>
module attributes {stable_mosaic.version = 11 : i64} {
  func.func @_gcn_kernel(%arg0: i32, %arg1: memref<16x32xbf16, #tpu.memory_space<vmem>>, %arg2: memref<8x16xbf16, #tpu.memory_space<vmem>>, %arg3: memref<32x256xbf16, #tpu.memory_space<vmem>>, %arg4: memref<1x256xf32, #tpu.memory_space<vmem>>, %arg5: memref<8x256xf32, #tpu.memory_space<vmem>>) attributes {dimension_semantics = [#tpu.dimension_semantics<parallel>], iteration_bounds = array<i64: 2>, scalar_prefetch = 0 : i64, scratch_operands = 0 : i64, tpu.core_type = #tpu.core_type<tc>, window_params = [{pipeline_mode = #tpu.pipeline_mode<synchronous>, transform_indices = @transform_0, window_bounds = array<i64: 16, 32>}, {transform_indices = @transform_1, window_bounds = array<i64: 8, 16>}, {pipeline_mode = #tpu.pipeline_mode<synchronous>, transform_indices = @transform_2, window_bounds = array<i64: 32, 256>}, {pipeline_mode = #tpu.pipeline_mode<synchronous>, transform_indices = @transform_3, window_bounds = array<i64: 1, 256>}, {transform_indices = @transform_4, window_bounds = array<i64: 8, 256>}]} {
    %c0 = arith.constant 0 : index
    %c0_0 = arith.constant 0 : index
    %0 = vector.load %arg2[%c0, %c0_0] : memref<8x16xbf16, #tpu.memory_space<vmem>>, vector<8x16xbf16>
    %c0_1 = arith.constant 0 : index
    %c0_2 = arith.constant 0 : index
    %1 = vector.load %arg1[%c0_1, %c0_2] : memref<16x32xbf16, #tpu.memory_space<vmem>>, vector<16x32xbf16>
    %cst = arith.constant dense<0.000000e+00> : vector<8x32xf32>
    %2 = tpu.matmul %0, %1, %cst {dimension_numbers = #tpu.dot_dimension_numbers<[1], [0], [0], [1], [0, 0, 1, 1], [], []>} : vector<8x16xbf16>, vector<16x32xbf16>, vector<8x32xf32> -> vector<8x32xf32>
    %3 = arith.truncf %2 : vector<8x32xf32> to vector<8x32xbf16>
    %c0_3 = arith.constant 0 : index
    %c0_4 = arith.constant 0 : index
    %4 = vector.load %arg3[%c0_3, %c0_4] : memref<32x256xbf16, #tpu.memory_space<vmem>>, vector<32x256xbf16>
    %cst_5 = arith.constant dense<0.000000e+00> : vector<8x256xf32>
    %5 = tpu.matmul %3, %4, %cst_5 {dimension_numbers = #tpu.dot_dimension_numbers<[1], [0], [0], [1], [0, 0, 1, 1], [], []>} : vector<8x32xbf16>, vector<32x256xbf16>, vector<8x256xf32> -> vector<8x256xf32>
    %c0_6 = arith.constant 0 : index
    %c0_7 = arith.constant 0 : index
    %6 = vector.load %arg4[%c0_6, %c0_7] : memref<1x256xf32, #tpu.memory_space<vmem>>, vector<1x256xf32>
    %7 = vector.broadcast %6 : vector<1x256xf32> to vector<8x256xf32>
    %8 = arith.addf %5, %7 : vector<8x256xf32>
    %c0_8 = arith.constant 0 : index
    %c0_9 = arith.constant 0 : index
    %9 = vector.load %arg5[%c0_8, %c0_9] : memref<8x256xf32, #tpu.memory_space<vmem>>, vector<8x256xf32>
    tpu.vector_store %arg5[%c0_8, %c0_9], %8 {strides = array<i32>} : memref<8x256xf32, #tpu.memory_space<vmem>>, vector<8x256xf32>,
    return
  }
  func.func @transform_0(%arg0: i32) -> (i32, i32) {
    %c0_i32 = arith.constant 0 : i32
    %c0_i32_0 = arith.constant 0 : i32
    %c0_i32_1 = arith.constant 0 : i32
    return %c0_i32, %c0_i32_0 : i32, i32
  }
  func.func @transform_1(%arg0: i32) -> (i32, i32) {
    %c0_i32 = arith.constant 0 : i32
    %c0_i32_0 = arith.constant 0 : i32
    return %arg0, %c0_i32 : i32, i32
  }
  func.func @transform_2(%arg0: i32) -> (i32, i32) {
    %c0_i32 = arith.constant 0 : i32
    %c0_i32_0 = arith.constant 0 : i32
    %c0_i32_1 = arith.constant 0 : i32
    return %c0_i32, %c0_i32_0 : i32, i32
  }
  func.func @transform_3(%arg0: i32) -> (i32, i32) {
    %c0_i32 = arith.constant 0 : i32
    %c0_i32_0 = arith.constant 0 : i32
    %c0_i32_1 = arith.constant 0 : i32
    return %c0_i32, %c0_i32_0 : i32, i32
  }
  func.func @transform_4(%arg0: i32) -> (i32, i32) {
    %c0_i32 = arith.constant 0 : i32
    %c0_i32_0 = arith.constant 0 : i32
    return %arg0, %c0_i32 : i32, i32
  }
}

</mosaic_0001>

<llo_original>
// kernel: tpu_custom_call.1
$region0: #{tpu_custom_call.1}
  #allocation0 [shape = 'u32[]', space=smem, size = 0x4, offset = 0x4, fixed_abs, tag = 'smem constant byte address 0x4 - core index']
  #allocation1 [shape = 'u32[144,128]{1,0:T(1,128)}', space=vmem, size = 0x12000, scoped, tag = 'internal scratch']
  %s0 = inlined_call_operand.hbm [shape: bf16[16,32], index: 0, kind: input, shape index: {}]
  %s1 = inlined_call_operand.hbm [shape: bf16[16,16], index: 1, kind: input, shape index: {}]
  %s2 = inlined_call_operand.hbm [shape: bf16[32,256], index: 2, kind: input, shape index: {}]
  %s3 = inlined_call_operand.vmem [shape: f32[1,256], index: 3, kind: input, shape index: {}]
  %s4 = inlined_call_operand.hbm [shape: f32[16,256], index: 4, kind: output, shape index: {}]
  %s5 = sld [smem:[#allocation0]]
  $region61: #{tpu_custom_call.1} parent=0
    _
  %s7 = ssub.s32 1, %s5
  %s8 = scalar_select 0, %s7, %s5
  $region1: #{tpu_custom_call.1} parent=0
    #allocation2 [shape = 'u8[4096]{0}', space=vmem, size = 0x1000, scoped, tag = 'input window, operand 0, single buffered']
    #allocation3 [shape = 's32[2]{0}', space=sflag, size = 0x8, scoped, tag = 'scoped memory for tpu_custom_call.1']
    #allocation4 [shape = 's32[2]{0}', space=sflag, size = 0x8, scoped, tag = 'scoped memory for tpu_custom_call.1']
    #allocation5 [shape = 'u8[4096]{0}', space=vmem, size = 0x1000, scoped, tag = 'input window, operand 1']
    #allocation6 [shape = 's32[2]{0}', space=sflag, size = 0x8, scoped, tag = 'scoped memory for tpu_custom_call.1']
    #allocation7 [shape = 'u8[16384]{0}', space=vmem, size = 0x4000, scoped, tag = 'input window, operand 2, single buffered']
    #allocation8 [shape = 'u8[16384]{0}', space=vmem, size = 0x4000, scoped, tag = 'output window, operand 0']
    %9 = vsyncpa [#allocation3], 0
    %10 = vsyncpa [#allocation6], 0
    %s11 = scalar_lea.sflag [#allocation6], 1
    %12 = vsyncpa %s11, 0
    %13 = vsyncpa [#allocation4], 0
    %s14 = scalar_lea.sflag [#allocation4], 1
    %15 = vsyncpa %s14, 0
    loop: start=0, step=1, limit=4
    $region2: #{tpu_custom_call.1} parent=1 // loop_pre_header
      _
    $region3: #{tpu_custom_call.1} parent=1 // loop_header
      %s17 = sphi 0, %s21
      %p18 = scmp.ge.s32.totalorder %s17, 4
      %s25 = sphi 0, %s25
      %s27 = sphi 0, %s25
      %s28 = sphi 0, %s27
      %s42 = sphi 0, %s28
      %s48 = sphi 0, %s50
      %s51 = sphi 0, %s48
      %s52 = sphi 0, %s51
      %s68 = sphi 0, %s52
      %s72 = sphi 0, %s72
      %s74 = sphi 0, %s72
      %s75 = sphi 0, %s74
      %s89 = sphi 0, %s75
      %s93 = sphi 0, %s93
      %s95 = sphi 0, %s93
      %s96 = sphi 0, %s95
      %s110 = sphi 0, %s96
      %s116 = sphi 0, %s118
      %s119 = sphi 0, %s116
      %s120 = sphi 0, %s119
      %s136 = sphi 0, %s120
    $region4: #{tpu_custom_call.1} parent=1 // loop_header_branch
      %20 = sbr.rel (%p18) target = $region8
    $region5: #{tpu_custom_call.1} parent=1 // loop_body
      %s22 = ssub.s32 %s17, 1
      %s23 = ssub.s32 %s17, 2
      %s24 = sadd.s32 %s17, 1
      %s26 = sadd.s32 %s25, 1
      %p29 = scmp.eq.s32.totalorder %s17, 1
      %p30 = scmp.ne.s32.totalorder %s25, %s27
      %p31 = scmp.eq.s32.totalorder %s17, 0
      %p32 = por %p30, %p31
      %p33 = scmp.ne.s32.totalorder %s25, %s27
      %p34 = scmp.eq.s32.totalorder %s22, 1
      %p35 = por %p33, %p34
      %p36 = scmp.ne.s32.totalorder %s27, %s28
      %p37 = scmp.eq.s32.totalorder %s22, 0
      %p38 = por %p36, %p37
      %p39 = scmp.ne.s32.totalorder %s27, %s28
      %p40 = scmp.eq.s32.totalorder %s23, 1
      %p41 = por %p39, %p40
      %p43 = scmp.ne.s32.totalorder %s28, %s42
      %p44 = scmp.eq.s32.totalorder %s23, 0
      %p45 = por %p43, %p44
      %s46 = ssub.s32 %s17, %s24
      %p47 = scmp.eq.s32.totalorder %s46, 0
      %s49 = sadd.s32 %s48, 1
      %s50 = scalar_select %p47, %s48, %s49
      %p53 = pneg %p47
      %p54 = scmp.eq.s32.totalorder %s17, 1
      %p55 = por %p53, %p54
      %p56 = scmp.ne.s32.totalorder %s48, %s51
      %p57 = scmp.eq.s32.totalorder %s17, 0
      %p58 = por %p56, %p57
      %p59 = scmp.ne.s32.totalorder %s48, %s51
      %p60 = scmp.eq.s32.totalorder %s22, 1
      %p61 = por %p59, %p60
      %p62 = scmp.ne.s32.totalorder %s51, %s52
      %p63 = scmp.eq.s32.totalorder %s22, 0
      %p64 = por %p62, %p63
      %p65 = scmp.ne.s32.totalorder %s51, %s52
      %p66 = scmp.eq.s32.totalorder %s23, 1
      %p67 = por %p65, %p66
      %p69 = scmp.ne.s32.totalorder %s52, %s68
      %p70 = scmp.eq.s32.totalorder %s23, 0
      %p71 = por %p69, %p70
      %s73 = sadd.s32 %s72, 1
      %p76 = scmp.eq.s32.totalorder %s17, 1
      %p77 = scmp.ne.s32.totalorder %s72, %s74
      %p78 = scmp.eq.s32.totalorder %s17, 0
      %p79 = por %p77, %p78
      %p80 = scmp.ne.s32.totalorder %s72, %s74
      %p81 = scmp.eq.s32.totalorder %s22, 1
      %p82 = por %p80, %p81
      %p83 = scmp.ne.s32.totalorder %s74, %s75
      %p84 = scmp.eq.s32.totalorder %s22, 0
      %p85 = por %p83, %p84
      %p86 = scmp.ne.s32.totalorder %s74, %s75
      %p87 = scmp.eq.s32.totalorder %s23, 1
      %p88 = por %p86, %p87
      %p90 = scmp.ne.s32.totalorder %s75, %s89
      %p91 = scmp.eq.s32.totalorder %s23, 0
      %p92 = por %p90, %p91
      %s94 = sadd.s32 %s93, 1
      %p97 = scmp.eq.s32.totalorder %s17, 1
      %p98 = scmp.ne.s32.totalorder %s93, %s95
      %p99 = scmp.eq.s32.totalorder %s17, 0
      %p100 = por %p98, %p99
      %p101 = scmp.ne.s32.totalorder %s93, %s95
      %p102 = scmp.eq.s32.totalorder %s22, 1
      %p103 = por %p101, %p102
      %p104 = scmp.ne.s32.totalorder %s95, %s96
      %p105 = scmp.eq.s32.totalorder %s22, 0
      %p106 = por %p104, %p105
      %p107 = scmp.ne.s32.totalorder %s95, %s96
      %p108 = scmp.eq.s32.totalorder %s23, 1
      %p109 = por %p107, %p108
      %p111 = scmp.ne.s32.totalorder %s96, %s110
      %p112 = scmp.eq.s32.totalorder %s23, 0
      %p113 = por %p111, %p112
      %s114 = ssub.s32 %s17, %s24
      %p115 = scmp.eq.s32.totalorder %s114, 0
      %s117 = sadd.s32 %s116, 1
      %s118 = scalar_select %p115, %s116, %s117
      %p121 = pneg %p115
      %p122 = scmp.eq.s32.totalorder %s17, 1
      %p123 = por %p121, %p122
      %p124 = scmp.ne.s32.totalorder %s116, %s119
      %p125 = scmp.eq.s32.totalorder %s17, 0
      %p126 = por %p124, %p125
      %p127 = scmp.ne.s32.totalorder %s116, %s119
      %p128 = scmp.eq.s32.totalorder %s22, 1
      %p129 = por %p127, %p128
      %p130 = scmp.ne.s32.totalorder %s119, %s120
      %p131 = scmp.eq.s32.totalorder %s22, 0
      %p132 = por %p130, %p131
      %p133 = scmp.ne.s32.totalorder %s119, %s120
      %p134 = scmp.eq.s32.totalorder %s23, 1
      %p135 = por %p133, %p134
      %p137 = scmp.ne.s32.totalorder %s120, %s136
      %p138 = scmp.eq.s32.totalorder %s23, 0
      %p139 = por %p137, %p138
      %p140 = scmp.le.s32.totalorder 1, %s17
      %p141 = scmp.lt.s32.totalorder %s17, 3
      %p142 = pnand %p140, %p141
      %p143 = pneg %p142
      // Predicated region
      $region9: #{tpu_custom_call.1} parent=5 // pred_check
        _
      $region10: #{tpu_custom_call.1} parent=5 // pred_check_branch
        %145 = sbr.rel (%p142) target = $region12
      $region11: #{tpu_custom_call.1} parent=5 // pred_region
        %s146 = ssub.s32 %s17, 1
        // Predicated region
        $region13: #{tpu_custom_call.1} parent=11 // pred_check
          %p147 = pneg %p38
        $region14: #{tpu_custom_call.1} parent=11 // pred_check_branch
          %149 = sbr.rel (%p147) target = $region16
        $region15: #{tpu_custom_call.1} parent=11 // pred_region
          %s151 = ssub.s32 128, 128
          %152 = vsyncadd [#allocation3], %s151
          %s153 = sshll.u32 [#allocation2], 4
          %s154 = int_to_ptr.vmem [resolvable:$true] %s153
          %159 = dma.hbm_to_vmem [thread:$0]  %s0, 128, %s154, [#allocation3], 64, 64, 4
        $region16: #{tpu_custom_call.1} parent=11 // pred_fallthru
          _
        // Predicated region
        $region17: #{tpu_custom_call.1} parent=11 // pred_check
          %p160 = pneg %p85
        $region18: #{tpu_custom_call.1} parent=11 // pred_check_branch
          %162 = sbr.rel (%p160) target = $region20
        $region19: #{tpu_custom_call.1} parent=11 // pred_region
          %s164 = ssub.s32 512, 512
          %165 = vsyncadd [#allocation6], %s164
          %s166 = sshll.u32 [#allocation7], 4
          %s167 = int_to_ptr.vmem [resolvable:$true] %s166
          %172 = dma.hbm_to_vmem [thread:$0]  %s2, 512, %s167, [#allocation6], 128, 128, 8
        $region20: #{tpu_custom_call.1} parent=11 // pred_fallthru
          _
        // Predicated region
        $region21: #{tpu_custom_call.1} parent=11 // pred_check
          %p173 = pneg %p106
        $region22: #{tpu_custom_call.1} parent=11 // pred_check_branch
          %175 = sbr.rel (%p173) target = $region24
        $region23: #{tpu_custom_call.1} parent=11 // pred_region
          _
        $region24: #{tpu_custom_call.1} parent=11 // pred_fallthru
          _
      $region12: #{tpu_custom_call.1} parent=5 // pred_fallthru
        _
      %p176 = scmp.lt.s32.totalorder %s17, 2
      // Predicated region
      $region25: #{tpu_custom_call.1} parent=5 // pred_check
        %p177 = pneg %p176
      $region26: #{tpu_custom_call.1} parent=5 // pred_check_branch
        %179 = sbr.rel (%p177) target = $region28
      $region27: #{tpu_custom_call.1} parent=5 // pred_region
        // Predicated region
        $region29: #{tpu_custom_call.1} parent=27 // pred_check
          %p180 = pneg %p58
        $region30: #{tpu_custom_call.1} parent=27 // pred_check_branch
          %182 = sbr.rel (%p180) target = $region32
        $region31: #{tpu_custom_call.1} parent=27 // pred_region
          %s183 = sand.u32 %s17, 1
          %s184 = scalar_lea.sflag [#allocation6], %s183
          %s185 = sand.u32 %s48, 1
          %s186 = smul.addr %s185, 4
          %s187 = scalar_lea.vmem [#allocation5], %s186
          %s189 = ssub.s32 64, 64
          %190 = vsyncadd %s184, %s189
          %s191 = smul.addr %s17, 64
          %s192 = scalar_lea.hbm %s1, %s191
          %s194 = sshll.u32 %s187, 4
          %s195 = int_to_ptr.vmem [resolvable:$true] %s194
          %197 = dma.hbm_to_vmem [thread:$0]  %s192, 64, %s195, %s184
        $region32: #{tpu_custom_call.1} parent=27 // pred_fallthru
          _
      $region28: #{tpu_custom_call.1} parent=5 // pred_fallthru
        _
      %p198 = scmp.le.s32.totalorder 1, %s17
      %p199 = scmp.lt.s32.totalorder %s17, 3
      %p200 = pnand %p198, %p199
      %p201 = pneg %p200
      // Predicated region
      $region33: #{tpu_custom_call.1} parent=5 // pred_check
        _
      $region34: #{tpu_custom_call.1} parent=5 // pred_check_branch
        %203 = sbr.rel (%p200) target = $region36
      $region35: #{tpu_custom_call.1} parent=5 // pred_region
        %s204 = ssub.s32 %s17, 1
        // Predicated region
        $region37: #{tpu_custom_call.1} parent=35 // pred_check
          %p205 = pneg %p38
        $region38: #{tpu_custom_call.1} parent=35 // pred_check_branch
          %207 = sbr.rel (%p205) target = $region40
        $region39: #{tpu_custom_call.1} parent=35 // pred_region
          %208 = dma.done [#allocation3], 128
        $region40: #{tpu_custom_call.1} parent=35 // pred_fallthru
          _
        %s209 = sand.u32 %s22, 1
        %s210 = scalar_lea.sflag [#allocation6], %s209
        %s211 = sand.u32 %s51, 1
        %s212 = smul.addr %s211, 4
        %s213 = scalar_lea.vmem [#allocation5], %s212
        // Predicated region
        $region41: #{tpu_custom_call.1} parent=35 // pred_check
          %p214 = pneg %p64
        $region42: #{tpu_custom_call.1} parent=35 // pred_check_branch
          %216 = sbr.rel (%p214) target = $region44
        $region43: #{tpu_custom_call.1} parent=35 // pred_region
          %217 = dma.done %s210, 64
        $region44: #{tpu_custom_call.1} parent=35 // pred_fallthru
          _
        // Predicated region
        $region45: #{tpu_custom_call.1} parent=35 // pred_check
          %p218 = pneg %p85
        $region46: #{tpu_custom_call.1} parent=35 // pred_check_branch
          %220 = sbr.rel (%p218) target = $region48
        $region47: #{tpu_custom_call.1} parent=35 // pred_region
          %221 = dma.done [#allocation6], 512
        $region48: #{tpu_custom_call.1} parent=35 // pred_fallthru
          _
        %p222 = pneg %p38
        %p223 = pneg %p35
        %s224 = sand.u32 %s22, 1
        %s225 = scalar_lea.sflag [#allocation6], %s224
        %s226 = sand.u32 %s51, 1
        %s227 = smul.addr %s226, 4
        %s228 = scalar_lea.vmem [#allocation5], %s227
        %p229 = pneg %p64
        %p230 = pneg %p61
        %p231 = pneg %p85
        %p232 = pneg %p82
        %p233 = pneg %p106
        %p234 = pneg %p103
        %p235 = pneg %p132
        %p236 = pneg %p129
        %s237 = sand.u32 %s119, 1
        %s238 = scalar_lea.sflag [#allocation4], %s237
        %s239 = sand.u32 %s119, 1
        %s240 = smul.addr %s239, 16
        %s241 = scalar_lea.vmem [#allocation8], %s240
        %v243 = vld [vmem:[%s213] sm:$0xf]
        %v244 = vld [vmem:[#allocation2] sm:$0xf]
        %v245 = vld [vmem:[#allocation2 + $0x4] sm:$0xf]
        %v248 = vunpack.c.l.b16 %v244
        %v249 = vunpack.c.l.b16 %v245
        %v250 = vpack.c.b16 %v249, %v248
        %vm252 = vcmask 130048
        %v254 = vsel %vm252, %v243, 0
        %256 = vmatprep.subr.bf16.mxu0 0
        %257 = vmatpush1.bf16.msra.mxu0 %v250
        %258 = vmatprep.subr.bf16.mxu0 0
        %259 = vmatpush1.bf16.msra.mxu0 0
        %260 = vmatprep.subr.bf16.mxu0 0
        %261 = vmatpush1.bf16.msra.mxu0 0
        %262 = vmatprep.subr.bf16.mxu0 0
        %263 = vmatpush1.bf16.msra.mxu0 0
        %264 = vmatprep.subr.bf16.mxu0 0
        %265 = vmatpush1.bf16.msra.mxu0 0
        %266 = vmatprep.subr.bf16.mxu0 0
        %267 = vmatpush1.bf16.msra.mxu0 0
        %268 = vmatprep.subr.bf16.mxu0 0
        %269 = vmatpush1.bf16.msra.mxu0 0
        %270 = vmatprep.subr.bf16.mxu0 0
        %271 = vmatpush1.bf16.msra.mxu0 0
        %272 = vmatprep.subr.bf16.mxu0 0
        %273 = vmatpush1.bf16.msra.mxu0 0
        %274 = vmatprep.subr.bf16.mxu0 0
        %275 = vmatpush1.bf16.msra.mxu0 0
        %276 = vmatprep.subr.bf16.mxu0 0
        %277 = vmatpush1.bf16.msra.mxu0 0
        %278 = vmatprep.subr.bf16.mxu0 0
        %279 = vmatpush1.bf16.msra.mxu0 0
        %280 = vmatprep.subr.bf16.mxu0 0
        %281 = vmatpush1.bf16.msra.mxu0 0
        %282 = vmatprep.subr.bf16.mxu0 0
        %283 = vmatpush1.bf16.msra.mxu0 0
        %284 = vmatprep.subr.bf16.mxu0 0
        %285 = vmatpush1.bf16.msra.mxu0 0
        %286 = vmatprep.subr.bf16.mxu0 0
        %287 = vmatpush1.bf16.msra.mxu0 0
        %288 = vmatprep.mubr.bf16.mxu0 0
        %289 = vmatmul.mubr.bf16.gmra.mrb[0].mxu0 %v254
        %v290 = vpop.f32.mrb[0].mxu0
        %v291 = vadd.f32 0.0, %v290
        %v292 = vpop.f32.mrb[0].mxu0
        %v293 = vpop.f32.mrb[0].mxu0
        %v294 = vpop.f32.mrb[0].mxu0
        %295 = vdwg.mxu0
        %v296 = vpack.c.bf16 %v291, %v291
        %v297 = vld [vmem:[#allocation7] sm:$0xff]
        %v298 = vld [vmem:[#allocation7 + $0x8] sm:$0xff]
        %v299 = vld [vmem:[#allocation7 + $0x10] sm:$0xff]
        %v300 = vld [vmem:[#allocation7 + $0x18] sm:$0xff]
        %v301 = vld [vmem:[%s3] sm:$0x3]
        %v303 = vlaneseq
        %v304 = vshrl.u32 %v303, 7
        %v305 = vsub.s32 0, %v304
        %v306 = vrot.slane %v301, %v305
        %v307 = vlaneseq
        %v308 = vshrl.u32 %v307, 7
        %v309 = vsub.s32 1, %v308
        %v310 = vrot.slane %v301, %v309
        %v317 = vunpack.c.l.b16 %v297
        %v318 = vunpack.c.h.b16 %v297
        %v319 = vunpack.c.l.b16 %v298
        %v320 = vunpack.c.h.b16 %v298
        %v321 = vunpack.c.l.b16 %v299
        %v322 = vunpack.c.h.b16 %v299
        %v323 = vunpack.c.l.b16 %v300
        %v324 = vunpack.c.h.b16 %v300
        %v325 = vpack.c.b16 %v319, %v317
        %v326 = vpack.c.b16 %v320, %v318
        %v327 = vpack.c.b16 %v323, %v321
        %v328 = vpack.c.b16 %v324, %v322
        %vm333 = vcmask 261120
        %v335 = vsel %vm333, %v296, 0
        %337 = vmatprep.subr.bf16.mxu0 %v326
        %338 = vmatpush1.bf16.msra.mxu0 %v325
        %339 = vmatprep.subr.bf16.mxu0 %v328
        %340 = vmatpush1.bf16.msra.mxu0 %v327
        %341 = vmatprep.subr.bf16.mxu0 0
        %342 = vmatpush1.bf16.msra.mxu0 0
        %343 = vmatprep.subr.bf16.mxu0 0
        %344 = vmatpush1.bf16.msra.mxu0 0
        %345 = vmatprep.subr.bf16.mxu0 0
        %346 = vmatpush1.bf16.msra.mxu0 0
        %347 = vmatprep.subr.bf16.mxu0 0
        %348 = vmatpush1.bf16.msra.mxu0 0
        %349 = vmatprep.subr.bf16.mxu0 0
        %350 = vmatpush1.bf16.msra.mxu0 0
        %351 = vmatprep.subr.bf16.mxu0 0
        %352 = vmatpush1.bf16.msra.mxu0 0
        %353 = vmatprep.subr.bf16.mxu0 0
        %354 = vmatpush1.bf16.msra.mxu0 0
        %355 = vmatprep.subr.bf16.mxu0 0
        %356 = vmatpush1.bf16.msra.mxu0 0
        %357 = vmatprep.subr.bf16.mxu0 0
        %358 = vmatpush1.bf16.msra.mxu0 0
        %359 = vmatprep.subr.bf16.mxu0 0
        %360 = vmatpush1.bf16.msra.mxu0 0
        %361 = vmatprep.subr.bf16.mxu0 0
        %362 = vmatpush1.bf16.msra.mxu0 0
        %363 = vmatprep.subr.bf16.mxu0 0
        %364 = vmatpush1.bf16.msra.mxu0 0
        %365 = vmatprep.subr.bf16.mxu0 0
        %366 = vmatpush1.bf16.msra.mxu0 0
        %367 = vmatprep.subr.bf16.mxu0 0
        %368 = vmatpush1.bf16.msra.mxu0 0
        %369 = vmatprep.mubr.bf16.mxu0 0
        %370 = vmatmul.mubr.bf16.gmra.mrb[0].mxu0 %v335
        %v371 = vpop.f32.mrb[0].mxu0
        %v372 = vadd.f32 %v306, %v371
        %v373 = vpop.f32.mrb[0].mxu0
        %v374 = vadd.f32 %v310, %v373
        %v375 = vpop.f32.mrb[0].mxu0
        %v376 = vpop.f32.mrb[0].mxu0
        %377 = vdwg.mxu0
        %378 = vst [vmem:[%s241] sm:$0xff] %v372
        %379 = vst [vmem:[%s241 + $0x8] sm:$0xff] %v374
        %s380 = sand.u32 %s119, 1
        %s381 = scalar_lea.sflag [#allocation4], %s380
        %s382 = sand.u32 %s119, 1
        %s383 = smul.addr %s382, 16
        %s384 = scalar_lea.vmem [#allocation8], %s383
        // Predicated region
        $region49: #{tpu_custom_call.1} parent=35 // pred_check
          %p385 = pneg %p129
        $region50: #{tpu_custom_call.1} parent=35 // pred_check_branch
          %387 = sbr.rel (%p385) target = $region52
        $region51: #{tpu_custom_call.1} parent=35 // pred_region
          %s389 = ssub.s32 256, 256
          %390 = vsyncadd %s381, %s389
          %s391 = smul.addr %s22, 2
          %s392 = smul.addr %s391, 128
          %s393 = scalar_lea.hbm %s4, %s392
          %s395 = sshll.u32 %s384, 4
          %s396 = int_to_ptr.vmem [resolvable:$true] %s395
          %398 = dma.vmem_to_hbm [thread:$0]  %s396, 256, %s393, %s381
        $region52: #{tpu_custom_call.1} parent=35 // pred_fallthru
          _
      $region36: #{tpu_custom_call.1} parent=5 // pred_fallthru
        _
      %p399 = scmp.le.s32.totalorder 2, %s17
      // Predicated region
      $region53: #{tpu_custom_call.1} parent=5 // pred_check
        %p400 = pneg %p399
      $region54: #{tpu_custom_call.1} parent=5 // pred_check_branch
        %402 = sbr.rel (%p400) target = $region56
      $region55: #{tpu_custom_call.1} parent=5 // pred_region
        %s403 = ssub.s32 %s17, 2
        // Predicated region
        $region57: #{tpu_custom_call.1} parent=55 // pred_check
          %p404 = pneg %p135
        $region58: #{tpu_custom_call.1} parent=55 // pred_check_branch
          %406 = sbr.rel (%p404) target = $region60
        $region59: #{tpu_custom_call.1} parent=55 // pred_region
          %s407 = sand.u32 %s120, 1
          %s408 = scalar_lea.sflag [#allocation4], %s407
          %s409 = sand.u32 %s120, 1
          %s410 = smul.addr %s409, 16
          %s411 = scalar_lea.vmem [#allocation8], %s410
          %412 = dma.done %s408, 256
        $region60: #{tpu_custom_call.1} parent=55 // pred_fallthru
          _
      $region56: #{tpu_custom_call.1} parent=5 // pred_fallthru
        _
    $region6: #{tpu_custom_call.1} parent=1 // loop_footer
      %s21 = sadd.s32 1, %s17
    $region7: #{tpu_custom_call.1} parent=1 // loop_footer_branch
      %16 = sbr.rel target = $region3
    $region8: #{tpu_custom_call.1} parent=1 // loop_exit
      _
    %413 = vsyncpa [#allocation3], 1
    %s414 = scalar_lea.sflag [#allocation3], 1
    %415 = vsyncpa %s414, 1
    %416 = vsyncpa [#allocation6], 1
    %s417 = scalar_lea.sflag [#allocation6], 1
    %418 = vsyncpa %s417, 1
    %419 = vsyncpa [#allocation4], 1
    %s420 = scalar_lea.sflag [#allocation4], 1
    %421 = vsyncpa %s420, 1

</llo_original>
